<compile_context>
chip_gen: v6e
topology: v6e:2x2x1
jax: 0.10.0
libtpu: 0.0.40
codegen_flags: <defaults>
</compile_context>

<pallas_src>
import math
from functools import partial

import jax
import jax.numpy as jnp
import numpy as np
from jax.experimental import pallas as pl
from jax.experimental.pallas import tpu as pltpu


# ----------------------------------------------------------------------------
# Generation-aware VMEM budget
# ----------------------------------------------------------------------------
_VMEM_LIMIT_CACHE = None


def _vmem_limit_bytes():
    """3/4 of physical VMEM, capped at 96 MiB (-> 48 MiB on 64-MiB v7x)."""
    global _VMEM_LIMIT_CACHE
    if _VMEM_LIMIT_CACHE is None:
        cap = 64 * 1024 * 1024
        try:
            info = pltpu.get_tpu_info()
            cap = int(getattr(info, "vmem_capacity_bytes", cap)) or cap
        except Exception:
            pass
        _VMEM_LIMIT_CACHE = int(min(cap * 3 // 4, 96 * 1024 * 1024))
    return _VMEM_LIMIT_CACHE


def _pick_tile(n, target, align):
    """Largest divisor of n that is a multiple of `align` and <= target.
    Falls back to n (the full dimension is always a legal block)."""
    target = max(1, min(target, n))
    for cand in range(target, 0, -1):
        if n % cand == 0 and cand % align == 0:
            return cand
    return n


def _even_tile(n, t, align):
    """Shrink tile t (a divisor of n) so that n // t becomes even, if possible."""
    for cand in range(t, 0, -1):
        if n % cand == 0 and cand % align == 0 and (n // cand) % 2 == 0:
            return cand
    return t


def _kv_candidates(s):
    cands = {s}
    for d in range(128, s, 128):
        if s % d == 0:
            cands.add(d)
    return sorted(cands, reverse=True)


# ----------------------------------------------------------------------------
# Tiled linear (matmul + bias)
# ----------------------------------------------------------------------------
def _linear_nok_kernel(x_ref, w_ref, b_ref, o_ref):
    # Single-pass: full K in one tile -> no accumulator scratch, no k axis.
    o_ref[...] = (
        jnp.dot(x_ref[...], w_ref[...], preferred_element_type=jnp.float32)
        + b_ref[...]
    ).astype(o_ref.dtype)


def _linear_acc_kernel(x_ref, w_ref, b_ref, o_ref, acc_ref):
    k = pl.program_id(2)

    @pl.when(k == 0)
    def _init():
        acc_ref[...] = jnp.zeros(acc_ref.shape, acc_ref.dtype)

    acc_ref[...] += jnp.dot(x_ref[...], w_ref[...],
                            preferred_element_type=jnp.float32)

    @pl.when(k == pl.num_programs(2) - 1)
    def _finalize():
        o_ref[...] = (acc_ref[...] + b_ref[...]).astype(o_ref.dtype)


def linear(x2d, w_kn, bias, *, out_dtype, block_m=512, block_n=512,
           max_single_k=2048):
    """y = x2d @ w_kn + bias.  Compute dtype = weight dtype (pre-cast)."""
    M, K = x2d.shape
    K2, N = w_kn.shape
    assert K == K2
    cdt = w_kn.dtype
    if x2d.dtype != cdt:
        x2d = x2d.astype(cdt)
    itemsize = np.dtype(cdt).itemsize
    align_m = 16 if itemsize == 2 else 8

    tm = _pick_tile(M, block_m, align_m)
    tn = _pick_tile(N, block_n, 128)
    # Keep the parallel tile product even so v7x's 2 TensorCores both get work.
    if ((M // tm) * (N // tn)) % 2 == 1:
        tm2 = _even_tile(M, tm, align_m)
        if (M // tm2) % 2 == 0:
            tm = tm2
        else:
            tn = _even_tile(N, tn, 128)

    b2d = bias.reshape(1, N).astype(jnp.float32)
    vlim = _vmem_limit_bytes()

    if K <= max_single_k:
        return pl.pallas_call(
            _linear_nok_kernel,
            out_shape=jax.ShapeDtypeStruct((M, N), out_dtype),
            grid=(M // tm, N // tn),
            in_specs=[
                pl.BlockSpec((tm, K), lambda i, j: (i, 0)),
                pl.BlockSpec((K, tn), lambda i, j: (0, j)),
                pl.BlockSpec((1, tn), lambda i, j: (0, j)),
            ],
            out_specs=pl.BlockSpec((tm, tn), lambda i, j: (i, j)),
            compiler_params=pltpu.CompilerParams(
                dimension_semantics=("parallel", "parallel"),
                vmem_limit_bytes=vlim,
            ),
        )(x2d, w_kn, b2d)

    # Fallback for very large contraction dims (not hit by this module).
    tk = _pick_tile(K, 1024, 128)
    return pl.pallas_call(
        _linear_acc_kernel,
        out_shape=jax.ShapeDtypeStruct((M, N), out_dtype),
        grid=(M // tm, N // tn, K // tk),
        in_specs=[
            pl.BlockSpec((tm, tk), lambda i, j, k: (i, k)),
            pl.BlockSpec((tk, tn), lambda i, j, k: (k, j)),
            pl.BlockSpec((1, tn), lambda i, j, k: (0, j)),
        ],
        out_specs=pl.BlockSpec((tm, tn), lambda i, j, k: (i, j)),
        scratch_shapes=[pltpu.VMEM((tm, tn), jnp.float32)],
        compiler_params=pltpu.CompilerParams(
            dimension_semantics=("parallel", "parallel", "arbitrary"),
            vmem_limit_bytes=vlim,
        ),
    )(x2d, w_kn, b2d)


# ----------------------------------------------------------------------------
# Flash attention over the fused QKV matrix, all heads per program
# ----------------------------------------------------------------------------
def _flash_attn_kernel(*refs, num_heads, head_dim, with_bias, compute_dtype):
    if with_bias:
        (q_ref, k_ref, v_ref, hw_ref, e_ref, o_ref, m_sc, l_sc, acc_sc) = refs
    else:
        (q_ref, k_ref, v_ref, o_ref, m_sc, l_sc, acc_sc) = refs

    ki = pl.program_id(2)

    @pl.when(ki == 0)
    def _init():
        m_sc[...] = jnp.full(m_sc.shape, -jnp.inf, m_sc.dtype)
        l_sc[...] = jnp.zeros(l_sc.shape, l_sc.dtype)
        acc_sc[...] = jnp.zeros(acc_sc.shape, acc_sc.dtype)

    if with_bias:
        e_tile = e_ref[...]            # (kh+kw, tk) constant 0/1 expansion

    # Static per-head loop: amortizes grid-step overhead / DMAs across heads.
    # (When head_dim < 128 the per-head operands are lane-underfilled; that is
    #  inherent to the head size, but the output store below stays dim-wide.)
    for h in range(num_heads):
        lo = h * head_dim
        hi = lo + head_dim
        q_h = q_ref[:, lo:hi]          # (bq, hd)   softmax scale pre-folded
        k_h = k_ref[:, lo:hi]          # (tk, hd)

        # scores (bq, tk): contract head_dim on the MXU, f32 accumulation
        s = jax.lax.dot_general(
            q_h, k_h, (((1,), (1,)), ((), ())),
            preferred_element_type=jnp.float32)

        if with_bias:
            # decomposed rel-pos bias via a single MXU matmul:
            #   bias[q, a*kw + w] = rel_h[q, a] + rel_w[q, w]
            s = s + jnp.dot(hw_ref[0, h], e_tile,
                            preferred_element_type=jnp.float32)

        # Online (flash) softmax update, all in f32.
        m_prev = m_sc[h]
        m_new = jnp.maximum(m_prev, jnp.max(s, axis=-1, keepdims=True))
        alpha = jnp.exp(m_prev - m_new)
        p = jnp.exp(s - m_new)
        l_sc[h] = alpha * l_sc[h] + jnp.sum(p, axis=-1, keepdims=True)
        acc_sc[h] = alpha * acc_sc[h] + jnp.dot(
            p.astype(compute_dtype), v_ref[:, lo:hi],
            preferred_element_type=jnp.float32)
        m_sc[h] = m_new

    @pl.when(ki == pl.num_programs(2) - 1)
    def _finalize():
        parts = [acc_sc[h] * pl.reciprocal(l_sc[h], approx=True)
                 for h in range(num_heads)]
        # Dense, dim-wide store (head-major channel order == PyTorch layout).
        o_ref[...] = jnp.concatenate(parts, axis=-1).astype(o_ref.dtype)


def flash_attention_fused(qkv, hw, e_mat, *, B, S, dim, num_heads,
                          block_q=None, block_kv=None,
                          compute_dtype=jnp.bfloat16, out_dtype=None):
    """qkv: (B*S, 3*dim) fused projection; hw: (B, nh, S, kh+kw) or None;
    e_mat: (kh+kw, S) 0/1 expansion matrix or None.  Returns (B*S, dim) in
    the module's (B, H, W, head, hd) channel order."""
    assert dim % 128 == 0, "fused-QKV column blocks require dim % 128 == 0"
    head_dim = dim // num_heads
    with_bias = hw is not None
    out_dtype = out_dtype or compute_dtype
    vlim = _vmem_limit_bytes()
    itemsize = np.dtype(compute_dtype).itemsize
    sub_align = 16 if itemsize == 2 else 8

    bq = _pick_tile(S, block_q or 256, sub_align)
    if (B * (S // bq)) % 2 == 1:           # keep parallel product even (v7x)
        bq = _even_tile(S, bq, sub_align)

    # KV tile: as large as the VMEM budget allows (full S when it fits).
    kv_budget = int(vlim * 0.4)            # double-buffered K + V stay under
    tk = None
    for cand in _kv_candidates(S):
        if cand <= (block_kv or S) and 4 * cand * dim * itemsize <= kv_budget:
            tk = cand
            break
    if tk is None:
        tk = _kv_candidates(S)[-1]

    nq, nk = S // bq, S // tk
    grid = (B, nq, nk)

    in_specs = [
        pl.BlockSpec((bq, dim), lambda b, qi, ki: (b * nq + qi, 0)),
        pl.BlockSpec((tk, dim), lambda b, qi, ki: (b * nk + ki, 1)),
        pl.BlockSpec((tk, dim), lambda b, qi, ki: (b * nk + ki, 2)),
    ]
    args = [qkv, qkv, qkv]
    if with_bias:
        hw_w = hw.shape[-1]
        in_specs += [
            # resident across the kv loop (index map independent of ki)
            pl.BlockSpec((1, num_heads, bq, hw_w),
                         lambda b, qi, ki: (b, 0, qi, 0)),
            pl.BlockSpec((hw_w, tk), lambda b, qi, ki: (0, ki)),
        ]
        args += [hw, e_mat]

    kernel = partial(_flash_attn_kernel, num_heads=num_heads,
                     head_dim=head_dim, with_bias=with_bias,
                     compute_dtype=compute_dtype)
    return pl.pallas_call(
        kernel,
        out_shape=jax.ShapeDtypeStruct((B * S, dim), out_dtype),
        grid=grid,
        in_specs=in_specs,
        out_specs=pl.BlockSpec((bq, dim), lambda b, qi, ki: (b * nq + qi, 0)),
        scratch_shapes=[
            pltpu.VMEM((num_heads, bq, 1), jnp.float32),        # running max
            pltpu.VMEM((num_heads, bq, 1), jnp.float32),        # running sum
            pltpu.VMEM((num_heads, bq, head_dim), jnp.float32),  # accumulator
        ],
        compiler_params=pltpu.CompilerParams(
            dimension_semantics=("parallel", "parallel", "arbitrary"),
            vmem_limit_bytes=vlim,
        ),
    )(*args)


# ----------------------------------------------------------------------------
# Relative-position terms (glue; exact port of get_rel_pos / decomposition)
# ----------------------------------------------------------------------------
def get_rel_pos(q_size, k_size, rel_pos):
    max_rel_dist = int(2 * max(q_size, k_size) - 1)
    # TODO(synk): F.interpolate(..., mode='linear') resize branch not
    # implemented; the module always builds rel_pos with length max_rel_dist,
    # so it is never triggered here.
    assert rel_pos.shape[0] == max_rel_dist
    q_coords = jnp.arange(q_size)[:, None] * max(k_size / q_size, 1.0)
    k_coords = jnp.arange(k_size)[None, :] * max(q_size / k_size, 1.0)
    relative_coords = q_coords - k_coords + (k_size - 1) * max(q_size / k_size, 1.0)
    return rel_pos[relative_coords.astype(jnp.int32)]


def rel_pos_operands(qkv, rel_pos_h, rel_pos_w, B, H, W, num_heads,
                     compute_dtype):
    """Builds hw = [rel_h | rel_w] of shape (B, nh, S, H+W) and the constant
    0/1 expansion matrix E (H+W, S) such that hw @ E is the decomposed bias."""
    S = H * W
    dim = qkv.shape[-1] // 3
    hd = dim // num_heads
    Rh = get_rel_pos(H, H, rel_pos_h)                       # (H, H, hd)
    Rw = get_rel_pos(W, W, rel_pos_w)                       # (W, W, hd)
    q = qkv[:, :dim].reshape(B, H, W, num_heads, hd).astype(jnp.float32)
    hi = jax.lax.Precision.HIGHEST
    rel_h = jnp.einsum("bhwnc,hkc->bnhwk", q, Rh, precision=hi)  # (B,nh,H,W,H)
    rel_w = jnp.einsum("bhwnc,wkc->bnhwk", q, Rw, precision=hi)  # (B,nh,H,W,W)
    hw = jnp.concatenate([rel_h, rel_w], axis=-1).reshape(B, num_heads, S, H + W)
    hw = hw.astype(compute_dtype)

    a_idx = np.arange(S) // W
    w_idx = np.arange(S) % W
    eh = (np.arange(H)[:, None] == a_idx[None, :])
    ew = (np.arange(W)[:, None] == w_idx[None, :])
    e_mat = jnp.asarray(np.concatenate([eh, ew], axis=0).astype(np.float32))
    return hw, e_mat.astype(compute_dtype)


# ----------------------------------------------------------------------------
# Parameter prep: pre-transpose + pre-cast weights, fold softmax scale into Q
# ----------------------------------------------------------------------------
def prepare_params(params, num_heads, compute_dtype=jnp.bfloat16):
    dim = params["w_proj"].shape[0]
    hd = dim // num_heads
    scale = hd ** (-0.5)
    col_scale = jnp.concatenate(
        [jnp.full((dim,), scale, jnp.float32), jnp.ones((2 * dim,), jnp.float32)]
    )
    return {
        "w_qkv_t": (params["w_qkv"].T * col_scale[None, :]).astype(compute_dtype),
        "b_qkv": params["b_qkv"] * col_scale,              # f32, added post-acc
        "w_proj_t": params["w_proj"].T.astype(compute_dtype),
        "b_proj": params["b_proj"],
        # q is pre-scaled; divide the rel tables so the fused bias still equals
        # einsum(q_unscaled, Rh/Rw) exactly as in the PyTorch module.
        "rel_pos_h": params["rel_pos_h"] / scale,
        "rel_pos_w": params["rel_pos_w"] / scale,
    }


# ----------------------------------------------------------------------------
# Full forward
# ----------------------------------------------------------------------------
def attention_forward(x, prepared, num_heads, use_rel_pos, *,
                      block_q=None, block_kv=None):
    B, H, W, dim = x.shape
    S = H * W
    compute_dtype = prepared["w_qkv_t"].dtype

    # QKV projection straight from channels-last x (single-pass tiled matmul).
    xc = x.reshape(B * S, dim).astype(compute_dtype)
    qkv = linear(xc, prepared["w_qkv_t"], prepared["b_qkv"],
                 out_dtype=compute_dtype)                  # (B*S, 3*dim)

    if use_rel_pos:
        hw, e_mat = rel_pos_operands(qkv, prepared["rel_pos_h"],
                                     prepared["rel_pos_w"], B, H, W,
                                     num_heads, compute_dtype)
    else:
        hw = e_mat = None

    # Flash attention reads Q/K/V directly out of the fused QKV matrix and
    # writes its output already in (B, H, W, head, hd) channel order.
    attn = flash_attention_fused(
        qkv, hw, e_mat, B=B, S=S, dim=dim, num_heads=num_heads,
        block_q=block_q, block_kv=block_kv,
        compute_dtype=compute_dtype, out_dtype=compute_dtype)

    # Output projection, final result in f32.
    out = linear(attn, prepared["w_proj_t"], prepared["b_proj"],
                 out_dtype=jnp.float32)
    return out.reshape(B, H, W, dim)


# ----------------------------------------------------------------------------
# Pure-JAX reference (mirrors the PyTorch forward) for correctness checks
# ----------------------------------------------------------------------------
def _reference_rel_pos_bias(q, rel_pos_h, rel_pos_w, q_size, k_size):
    q_h, q_w = q_size
    k_h, k_w = k_size
    Rh = get_rel_pos(q_h, k_h, rel_pos_h)
    Rw = get_rel_pos(q_w, k_w, rel_pos_w)
    Bn, _, dim = q.shape
    r_q = q.reshape(Bn, q_h, q_w, dim)
    hi = jax.lax.Precision.HIGHEST
    rel_h = jnp.einsum("bhwc,hkc->bhwk", r_q, Rh, precision=hi)
    rel_w = jnp.einsum("bhwc,wkc->bhwk", r_q, Rw, precision=hi)
    bias = rel_h[:, :, :, :, None] + rel_w[:, :, :, None, :]
    return bias.reshape(Bn, q_h * q_w, k_h * k_w)


def reference_forward(x, params, num_heads, use_rel_pos):
    B, H, W, dim = x.shape
    hd = dim // num_heads
    scale = hd ** (-0.5)
    S = H * W
    hi = jax.lax.Precision.HIGHEST

    qkv = (
        jnp.einsum("md,nd->mn", x.reshape(B * S, dim), params["w_qkv"], precision=hi)
        + params["b_qkv"]
    )
    qkv = (
        qkv.reshape(B, S, 3, num_heads, hd)
        .transpose(2, 0, 3, 1, 4)
        .reshape(3, B * num_heads, S, hd)
    )
    q, k, v = qkv[0], qkv[1], qkv[2]
    attn = jnp.einsum("bqd,bkd->bqk", q * scale, k, precision=hi)
    if use_rel_pos:
        attn = attn + _reference_rel_pos_bias(
            q, params["rel_pos_h"], params["rel_pos_w"], (H, W), (H, W)
        )
    attn = jax.nn.softmax(attn, axis=-1)
    out = jnp.einsum("bqk,bkd->bqd", attn, v, precision=hi)
    out = (
        out.reshape(B, num_heads, H, W, hd)
        .transpose(0, 2, 3, 1, 4)
        .reshape(B * S, dim)
    )
    out = jnp.einsum("md,nd->mn", out, params["w_proj"], precision=hi) + params["b_proj"]
    return out.reshape(B, H, W, dim)


# ----------------------------------------------------------------------------
# Deterministic parameter init (shapes from Attention.__init__)
# ----------------------------------------------------------------------------
def init_params(key, dim, num_heads, input_size):
    H, W = input_size
    hd = dim // num_heads
    k1, k2, k3, k4, k5, k6 = jax.random.split(key, 6)
    return {
        # nn.Linear(dim, 3*dim): weight (3*dim, dim), bias (3*dim,)
        "w_qkv": jax.random.normal(k1, (3 * dim, dim), jnp.float32) / math.sqrt(dim),
        "b_qkv": 0.02 * jax.random.normal(k2, (3 * dim,), jnp.float32),
        # nn.Linear(dim, dim)
        "w_proj": jax.random.normal(k3, (dim, dim), jnp.float32) / math.sqrt(dim),
        "b_proj": 0.02 * jax.random.normal(k4, (dim,), jnp.float32),
        # rel_pos params (module zero-inits; small random values exercise path)
        "rel_pos_h": 0.02 * jax.random.normal(k5, (2 * H - 1, hd), jnp.float32),
        "rel_pos_w": 0.02 * jax.random.normal(k6, (2 * W - 1, hd), jnp.float32),
    }


if __name__ == "__main__":
    B, H, W = 2, 16, 16
    dim, num_heads = 128, 4

    key = jax.random.PRNGKey(0)
    kx, kp = jax.random.split(key)
    x = jax.random.normal(kx, (B, H, W, dim), jnp.float32)
    params = init_params(kp, dim, num_heads, (H, W))

    ref_rel = reference_forward(x, params, num_heads, True)
    ref_norel = reference_forward(x, params, num_heads, False)

    # 1) f32 MXU path, rel-pos on, small tiles so the multi-q-tile and
    #    multi-kv-step online-softmax paths are exercised (grid 2x2x2).
    prep_f32 = prepare_params(params, num_heads, jnp.float32)
    out = jax.block_until_ready(
        attention_forward(x, prep_f32, num_heads, True,
                          block_q=128, block_kv=128)
    )
    assert out.shape == (B, H, W, dim)
    np.testing.assert_allclose(np.asarray(out), np.asarray(ref_rel),
                               rtol=1e-2, atol=1e-2)

    # 2) f32 path, no rel-pos (bias inputs dropped entirely), default tiles.
    out2 = jax.block_until_ready(
        attention_forward(x, prep_f32, num_heads, False)
    )
    np.testing.assert_allclose(np.asarray(out2), np.asarray(ref_norel),
                               rtol=1e-2, atol=1e-2)

    # 3) bf16 MXU operands / f32 accumulation (default performance config,
    #    auto tile selection); looser tolerance for bf16 operand rounding.
    prep_bf16 = prepare_params(params, num_heads, jnp.bfloat16)
    out3 = jax.block_until_ready(
        attention_forward(x, prep_bf16, num_heads, True)
    )
    np.testing.assert_allclose(np.asarray(out3), np.asarray(ref_rel),
                               rtol=4e-2, atol=4e-2)

    print("KERNEL_OK")
</pallas_src>

<mosaic_0001>
module attributes {stable_mosaic.version = 11 : i64} {
  func.func @_linear_nok_kernel(%arg0: i32, %arg1: i32, %arg2: memref<256x128xf32, #tpu.memory_space<vmem>>, %arg3: memref<128x384xf32, #tpu.memory_space<vmem>>, %arg4: memref<1x384xf32, #tpu.memory_space<vmem>>, %arg5: memref<256x384xf32, #tpu.memory_space<vmem>>) attributes {dimension_semantics = [#tpu.dimension_semantics<parallel>, #tpu.dimension_semantics<parallel>], iteration_bounds = array<i64: 2, 1>, scalar_prefetch = 0 : i64, scratch_operands = 0 : i64, tpu.core_type = #tpu.core_type<tc>, window_params = [{transform_indices = @transform_0, window_bounds = array<i64: 256, 128>}, {transform_indices = @transform_1, window_bounds = array<i64: 128, 384>}, {transform_indices = @transform_2, window_bounds = array<i64: 1, 384>}, {transform_indices = @transform_3, window_bounds = array<i64: 256, 384>}]} {
    %c0 = arith.constant 0 : index
    %c0_0 = arith.constant 0 : index
    %0 = vector.load %arg2[%c0, %c0_0] : memref<256x128xf32, #tpu.memory_space<vmem>>, vector<256x128xf32>
    %c0_1 = arith.constant 0 : index
    %c0_2 = arith.constant 0 : index
    %1 = vector.load %arg3[%c0_1, %c0_2] : memref<128x384xf32, #tpu.memory_space<vmem>>, vector<128x384xf32>
    %cst = arith.constant dense<0.000000e+00> : vector<256x384xf32>
    %2 = tpu.matmul %0, %1, %cst {dimension_numbers = #tpu.dot_dimension_numbers<[1], [0], [0], [1], [0, 0, 1, 1], [], []>} : vector<256x128xf32>, vector<128x384xf32>, vector<256x384xf32> -> vector<256x384xf32>
    %c0_3 = arith.constant 0 : index
    %c0_4 = arith.constant 0 : index
    %3 = vector.load %arg4[%c0_3, %c0_4] : memref<1x384xf32, #tpu.memory_space<vmem>>, vector<1x384xf32>
    %4 = vector.broadcast %3 : vector<1x384xf32> to vector<256x384xf32>
    %5 = arith.addf %2, %4 : vector<256x384xf32>
    %c0_5 = arith.constant 0 : index
    %c0_6 = arith.constant 0 : index
    %6 = vector.load %arg5[%c0_5, %c0_6] : memref<256x384xf32, #tpu.memory_space<vmem>>, vector<256x384xf32>
    tpu.vector_store %arg5[%c0_5, %c0_6], %5 {strides = array<i32>} : memref<256x384xf32, #tpu.memory_space<vmem>>, vector<256x384xf32>,
    return
  }
  func.func @transform_0(%arg0: i32, %arg1: i32) -> (i32, i32) {
    %c0_i32 = arith.constant 0 : i32
    %c0_i32_0 = arith.constant 0 : i32
    return %arg0, %c0_i32 : i32, i32
  }
  func.func @transform_1(%arg0: i32, %arg1: i32) -> (i32, i32) {
    %c0_i32 = arith.constant 0 : i32
    %c0_i32_0 = arith.constant 0 : i32
    return %c0_i32, %arg1 : i32, i32
  }
  func.func @transform_2(%arg0: i32, %arg1: i32) -> (i32, i32) {
    %c0_i32 = arith.constant 0 : i32
    %c0_i32_0 = arith.constant 0 : i32
    return %c0_i32, %arg1 : i32, i32
  }
  func.func @transform_3(%arg0: i32, %arg1: i32) -> (i32, i32) {
    %c0_i32 = arith.constant 0 : i32
    return %arg0, %arg1 : i32, i32
  }
}

</mosaic_0001>

<llo_original>
// kernel: tpu_custom_call.1
$region0: #{tpu_custom_call.1}
  #allocation0 [shape = 'u32[]', space=smem, size = 0x4, offset = 0x4, fixed_abs, tag = 'smem constant byte address 0x4 - core index']
  #allocation1 [shape = 'u32[144,128]{1,0:T(1,128)}', space=vmem, size = 0x12000, scoped, tag = 'internal scratch']
  %s0 = inlined_call_operand.hbm [shape: f32[512,128], index: 0, kind: input, shape index: {}]
  %s1 = inlined_call_operand.hbm [shape: f32[128,384], index: 1, kind: input, shape index: {}]
  %s2 = inlined_call_operand.vmem [shape: f32[1,384], index: 2, kind: input, shape index: {}]
  %s3 = inlined_call_operand.hbm [shape: f32[512,384], index: 3, kind: output, shape index: {}]
  %s4 = sld [smem:[#allocation0]]
  $region53: #{tpu_custom_call.1} parent=0
    _
  %s6 = ssub.s32 1, %s4
  %s7 = scalar_select 0, %s6, %s4
  $region1: #{tpu_custom_call.1} parent=0
    #allocation2 [shape = 'u8[262144]{0}', space=vmem, size = 0x40000, scoped, tag = 'input window, operand 0']
    #allocation3 [shape = 's32[2]{0}', space=sflag, size = 0x8, scoped, tag = 'scoped memory for tpu_custom_call.1']
    #allocation4 [shape = 's32[2]{0}', space=sflag, size = 0x8, scoped, tag = 'scoped memory for tpu_custom_call.1']
    #allocation5 [shape = 'u8[196608]{0}', space=vmem, size = 0x30000, scoped, tag = 'input window, operand 1, single buffered']
    #allocation6 [shape = 's32[1]{0}', space=sflag, size = 0x4, scoped, tag = 'scoped memory for tpu_custom_call.1']
    #allocation7 [shape = 'u8[786432]{0}', space=vmem, size = 0xc0000, scoped, tag = 'output window, operand 0']
    %8 = vsyncpa [#allocation3], 0
    %s9 = scalar_lea.sflag [#allocation3], 1
    %10 = vsyncpa %s9, 0
    %11 = vsyncpa [#allocation6], 0
    %12 = vsyncpa [#allocation4], 0
    %s13 = scalar_lea.sflag [#allocation4], 1
    %14 = vsyncpa %s13, 0
    loop: start=0, step=1, limit=4
    $region2: #{tpu_custom_call.1} parent=1 // loop_pre_header
      _
    $region3: #{tpu_custom_call.1} parent=1 // loop_header
      %s16 = sphi 0, %s20
      %p17 = scmp.ge.s32.totalorder %s16, 4
      %s23 = sphi 0, %s35
      %s24 = sphi 0, %s31
      %s25 = sphi 0, %s23
      %s26 = sphi 0, %s24
      %s27 = sphi 0, %s25
      %s28 = sphi 0, %s26
      %s38 = sphi 0, %s40
      %s41 = sphi 0, %s38
      %s42 = sphi 0, %s41
      %s58 = sphi 0, %s42
      %s64 = sphi 0, %s66
      %s67 = sphi 0, %s64
      %s68 = sphi 0, %s67
      %s84 = sphi 0, %s68
      %s90 = sphi 0, %s92
      %s93 = sphi 0, %s90
      %s94 = sphi 0, %s93
      %s110 = sphi 0, %s94
      %s118 = sphi 0, %s120
      %s121 = sphi 0, %s118
      %s122 = sphi 0, %s121
      %s138 = sphi 0, %s122
    $region4: #{tpu_custom_call.1} parent=1 // loop_header_branch
      %19 = sbr.rel (%p17) target = $region8
    $region5: #{tpu_custom_call.1} parent=1 // loop_body
      %s21 = ssub.s32 %s16, 1
      %s22 = ssub.s32 %s16, 2
      %s29 = sadd.s32 1, %s24
      %p30 = scmp.ge.s32.totalorder %s29, 1
      %s31 = scalar_select %p30, 0, %s29
      %s32 = sadd.s32 1, %s23
      %s33 = scalar_select %p30, %s32, %s23
      %p34 = scmp.ge.s32.totalorder %s33, 2
      %s35 = scalar_select %p34, 0, %s33
      %s36 = ssub.s32 %s23, %s35
      %p37 = scmp.eq.s32.totalorder %s36, 0
      %s39 = sadd.s32 %s38, 1
      %s40 = scalar_select %p37, %s38, %s39
      %p43 = pneg %p37
      %p44 = scmp.eq.s32.totalorder %s16, 1
      %p45 = por %p43, %p44
      %p46 = scmp.ne.s32.totalorder %s38, %s41
      %p47 = scmp.eq.s32.totalorder %s16, 0
      %p48 = por %p46, %p47
      %p49 = scmp.ne.s32.totalorder %s38, %s41
      %p50 = scmp.eq.s32.totalorder %s21, 1
      %p51 = por %p49, %p50
      %p52 = scmp.ne.s32.totalorder %s41, %s42
      %p53 = scmp.eq.s32.totalorder %s21, 0
      %p54 = por %p52, %p53
      %p55 = scmp.ne.s32.totalorder %s41, %s42
      %p56 = scmp.eq.s32.totalorder %s22, 1
      %p57 = por %p55, %p56
      %p59 = scmp.ne.s32.totalorder %s42, %s58
      %p60 = scmp.eq.s32.totalorder %s22, 0
      %p61 = por %p59, %p60
      %s62 = ssub.s32 %s24, %s31
      %p63 = scmp.eq.s32.totalorder %s62, 0
      %s65 = sadd.s32 %s64, 1
      %s66 = scalar_select %p63, %s64, %s65
      %p69 = pneg %p63
      %p70 = scmp.eq.s32.totalorder %s16, 1
      %p71 = por %p69, %p70
      %p72 = scmp.ne.s32.totalorder %s64, %s67
      %p73 = scmp.eq.s32.totalorder %s16, 0
      %p74 = por %p72, %p73
      %p75 = scmp.ne.s32.totalorder %s64, %s67
      %p76 = scmp.eq.s32.totalorder %s21, 1
      %p77 = por %p75, %p76
      %p78 = scmp.ne.s32.totalorder %s67, %s68
      %p79 = scmp.eq.s32.totalorder %s21, 0
      %p80 = por %p78, %p79
      %p81 = scmp.ne.s32.totalorder %s67, %s68
      %p82 = scmp.eq.s32.totalorder %s22, 1
      %p83 = por %p81, %p82
      %p85 = scmp.ne.s32.totalorder %s68, %s84
      %p86 = scmp.eq.s32.totalorder %s22, 0
      %p87 = por %p85, %p86
      %s88 = ssub.s32 %s24, %s31
      %p89 = scmp.eq.s32.totalorder %s88, 0
      %s91 = sadd.s32 %s90, 1
      %s92 = scalar_select %p89, %s90, %s91
      %p95 = pneg %p89
      %p96 = scmp.eq.s32.totalorder %s16, 1
      %p97 = por %p95, %p96
      %p98 = scmp.ne.s32.totalorder %s90, %s93
      %p99 = scmp.eq.s32.totalorder %s16, 0
      %p100 = por %p98, %p99
      %p101 = scmp.ne.s32.totalorder %s90, %s93
      %p102 = scmp.eq.s32.totalorder %s21, 1
      %p103 = por %p101, %p102
      %p104 = scmp.ne.s32.totalorder %s93, %s94
      %p105 = scmp.eq.s32.totalorder %s21, 0
      %p106 = por %p104, %p105
      %p107 = scmp.ne.s32.totalorder %s93, %s94
      %p108 = scmp.eq.s32.totalorder %s22, 1
      %p109 = por %p107, %p108
      %p111 = scmp.ne.s32.totalorder %s94, %s110
      %p112 = scmp.eq.s32.totalorder %s22, 0
      %p113 = por %p111, %p112
      %s114 = ssub.s32 %s23, %s35
      %s115 = ssub.s32 %s24, %s31
      %s116 = sor.u32 %s114, %s115
      %p117 = scmp.eq.s32.totalorder %s116, 0
      %s119 = sadd.s32 %s118, 1
      %s120 = scalar_select %p117, %s118, %s119
      %p123 = pneg %p117
      %p124 = scmp.eq.s32.totalorder %s16, 1
      %p125 = por %p123, %p124
      %p126 = scmp.ne.s32.totalorder %s118, %s121
      %p127 = scmp.eq.s32.totalorder %s16, 0
      %p128 = por %p126, %p127
      %p129 = scmp.ne.s32.totalorder %s118, %s121
      %p130 = scmp.eq.s32.totalorder %s21, 1
      %p131 = por %p129, %p130
      %p132 = scmp.ne.s32.totalorder %s121, %s122
      %p133 = scmp.eq.s32.totalorder %s21, 0
      %p134 = por %p132, %p133
      %p135 = scmp.ne.s32.totalorder %s121, %s122
      %p136 = scmp.eq.s32.totalorder %s22, 1
      %p137 = por %p135, %p136
      %p139 = scmp.ne.s32.totalorder %s122, %s138
      %p140 = scmp.eq.s32.totalorder %s22, 0
      %p141 = por %p139, %p140
      %p142 = scmp.le.s32.totalorder 1, %s16
      %p143 = scmp.lt.s32.totalorder %s16, 3
      %p144 = pnand %p142, %p143
      %p145 = pneg %p144
      // Predicated region
      $region9: #{tpu_custom_call.1} parent=5 // pred_check
        _
      $region10: #{tpu_custom_call.1} parent=5 // pred_check_branch
        %147 = sbr.rel (%p144) target = $region12
      $region11: #{tpu_custom_call.1} parent=5 // pred_region
        %s148 = ssub.s32 %s16, 1
        // Predicated region
        $region13: #{tpu_custom_call.1} parent=11 // pred_check
          %p149 = pneg %p80
        $region14: #{tpu_custom_call.1} parent=11 // pred_check_branch
          %151 = sbr.rel (%p149) target = $region16
        $region15: #{tpu_custom_call.1} parent=11 // pred_region
          %s152 = smul.u32 3, %s26
          %s154 = ssub.s32 6144, 6144
          %155 = vsyncadd [#allocation6], %s154
          %s156 = smul.addr %s152, 128
          %s157 = scalar_lea.hbm %s1, %s156
          %s158 = sshll.u32 [#allocation5], 4
          %s159 = int_to_ptr.vmem [resolvable:$true] %s158
          %164 = dma.hbm_to_vmem [thread:$0]  %s157, 6144, %s159, [#allocation6], 384, 384, 24
        $region16: #{tpu_custom_call.1} parent=11 // pred_fallthru
          _
        // Predicated region
        $region17: #{tpu_custom_call.1} parent=11 // pred_check
          %p165 = pneg %p106
        $region18: #{tpu_custom_call.1} parent=11 // pred_check_branch
          %167 = sbr.rel (%p165) target = $region20
        $region19: #{tpu_custom_call.1} parent=11 // pred_region
          %s168 = smul.u32 3, %s26
          %p169 = scmp.lt.s32.totalorder %s168, 2
          %s170 = scalar_select %p169, %s168, 2
          %s171 = scalar_lea.vmem %s2, %s170
          %s172 = smul.u32 3, %s26
        $region20: #{tpu_custom_call.1} parent=11 // pred_fallthru
          _
      $region12: #{tpu_custom_call.1} parent=5 // pred_fallthru
        _
      %p173 = scmp.lt.s32.totalorder %s16, 2
      // Predicated region
      $region21: #{tpu_custom_call.1} parent=5 // pred_check
        %p174 = pneg %p173
      $region22: #{tpu_custom_call.1} parent=5 // pred_check_branch
        %176 = sbr.rel (%p174) target = $region24
      $region23: #{tpu_custom_call.1} parent=5 // pred_region
        // Predicated region
        $region25: #{tpu_custom_call.1} parent=23 // pred_check
          %p177 = pneg %p48
        $region26: #{tpu_custom_call.1} parent=23 // pred_check_branch
          %179 = sbr.rel (%p177) target = $region28
        $region27: #{tpu_custom_call.1} parent=23 // pred_region
          %s180 = sand.u32 %s38, 1
          %s181 = scalar_lea.sflag [#allocation3], %s180
          %s182 = sand.u32 %s38, 1
          %s183 = smul.addr %s182, 256
          %s184 = scalar_lea.vmem [#allocation2], %s183
          %s185 = smul.u32 32, %s23
          %s187 = ssub.s32 4096, 4096
          %188 = vsyncadd %s181, %s187
          %s189 = smul.addr %s185, 128
          %s190 = scalar_lea.hbm %s0, %s189
          %s191 = sshll.u32 %s184, 4
          %s192 = int_to_ptr.vmem [resolvable:$true] %s191
          %197 = dma.hbm_to_vmem [thread:$0]  %s190, 4096, %s192, %s181, 128, 128, 8
        $region28: #{tpu_custom_call.1} parent=23 // pred_fallthru
          _
      $region24: #{tpu_custom_call.1} parent=5 // pred_fallthru
        _
      %p198 = scmp.le.s32.totalorder 1, %s16
      %p199 = scmp.lt.s32.totalorder %s16, 3
      %p200 = pnand %p198, %p199
      %p201 = pneg %p200
      // Predicated region
      $region29: #{tpu_custom_call.1} parent=5 // pred_check
        _
      $region30: #{tpu_custom_call.1} parent=5 // pred_check_branch
        %203 = sbr.rel (%p200) target = $region32
      $region31: #{tpu_custom_call.1} parent=5 // pred_region
        %s204 = ssub.s32 %s16, 1
        %s205 = sand.u32 %s41, 1
        %s206 = scalar_lea.sflag [#allocation3], %s205
        %s207 = sand.u32 %s41, 1
        %s208 = smul.addr %s207, 256
        %s209 = scalar_lea.vmem [#allocation2], %s208
        // Predicated region
        $region33: #{tpu_custom_call.1} parent=31 // pred_check
          %p210 = pneg %p54
        $region34: #{tpu_custom_call.1} parent=31 // pred_check_branch
          %212 = sbr.rel (%p210) target = $region36
        $region35: #{tpu_custom_call.1} parent=31 // pred_region
          %213 = dma.done %s206, 4096
        $region36: #{tpu_custom_call.1} parent=31 // pred_fallthru
          _
        // Predicated region
        $region37: #{tpu_custom_call.1} parent=31 // pred_check
          %p214 = pneg %p80
        $region38: #{tpu_custom_call.1} parent=31 // pred_check_branch
          %216 = sbr.rel (%p214) target = $region40
        $region39: #{tpu_custom_call.1} parent=31 // pred_region
          %217 = dma.done [#allocation6], 6144
        $region40: #{tpu_custom_call.1} parent=31 // pred_fallthru
          _
        %s218 = sand.u32 %s41, 1
        %s219 = scalar_lea.sflag [#allocation3], %s218
        %s220 = sand.u32 %s41, 1
        %s221 = smul.addr %s220, 256
        %s222 = scalar_lea.vmem [#allocation2], %s221
        %p223 = pneg %p54
        %p224 = pneg %p51
        %p225 = pneg %p80
        %p226 = pneg %p77
        %s227 = smul.u32 3, %s26
        %p228 = scmp.lt.s32.totalorder %s227, 2
        %s229 = scalar_select %p228, %s227, 2
        %s230 = scalar_lea.vmem %s2, %s229
        %p231 = pneg %p106
        %p232 = pneg %p103
        %p233 = pneg %p134
        %p234 = pneg %p131
        %s235 = sand.u32 %s121, 1
        %s236 = scalar_lea.sflag [#allocation4], %s235
        %s237 = sand.u32 %s121, 1
        %s238 = smul.addr %s237, 768
        %s239 = scalar_lea.vmem [#allocation7], %s238
        %s240 = smul.u32 32, %s25
        %s241 = smul.u32 3, %s26
        %s242 = smul.u32 3, %s26
        %p243 = scmp.lt.s32.totalorder %s242, 2
        %s244 = scalar_select %p243, %s242, 2
        %s245 = scalar_lea.vmem %s2, %s244
        %s246 = smul.u32 3, %s26
        %s247 = smul.u32 32, %s25
        %s248 = smul.u32 3, %s26
        %v249 = vld [vmem:[%s209] sm:$0xff]
        %v250 = vld [vmem:[%s209 + $0x8] sm:$0xff]
        %v251 = vld [vmem:[%s209 + $0x10] sm:$0xff]
        %v252 = vld [vmem:[%s209 + $0x18] sm:$0xff]
        %v253 = vld [vmem:[%s209 + $0x20] sm:$0xff]
        %v254 = vld [vmem:[%s209 + $0x28] sm:$0xff]
        %v255 = vld [vmem:[%s209 + $0x30] sm:$0xff]
        %v256 = vld [vmem:[%s209 + $0x38] sm:$0xff]
        %v257 = vld [vmem:[%s209 + $0x40] sm:$0xff]
        %v258 = vld [vmem:[%s209 + $0x48] sm:$0xff]
        %v259 = vld [vmem:[%s209 + $0x50] sm:$0xff]
        %v260 = vld [vmem:[%s209 + $0x58] sm:$0xff]
        %v261 = vld [vmem:[%s209 + $0x60] sm:$0xff]
        %v262 = vld [vmem:[%s209 + $0x68] sm:$0xff]
        %v263 = vld [vmem:[%s209 + $0x70] sm:$0xff]
        %v264 = vld [vmem:[%s209 + $0x78] sm:$0xff]
        %v265 = vld [vmem:[%s209 + $0x80] sm:$0xff]
        %v266 = vld [vmem:[%s209 + $0x88] sm:$0xff]
        %v267 = vld [vmem:[%s209 + $0x90] sm:$0xff]
        %v268 = vld [vmem:[%s209 + $0x98] sm:$0xff]
        %v269 = vld [vmem:[%s209 + $0xa0] sm:$0xff]
        %v270 = vld [vmem:[%s209 + $0xa8] sm:$0xff]
        %v271 = vld [vmem:[%s209 + $0xb0] sm:$0xff]
        %v272 = vld [vmem:[%s209 + $0xb8] sm:$0xff]
        %v273 = vld [vmem:[%s209 + $0xc0] sm:$0xff]
        %v274 = vld [vmem:[%s209 + $0xc8] sm:$0xff]
        %v275 = vld [vmem:[%s209 + $0xd0] sm:$0xff]
        %v276 = vld [vmem:[%s209 + $0xd8] sm:$0xff]
        %v277 = vld [vmem:[%s209 + $0xe0] sm:$0xff]
        %v278 = vld [vmem:[%s209 + $0xe8] sm:$0xff]
        %v279 = vld [vmem:[%s209 + $0xf0] sm:$0xff]
        %v280 = vld [vmem:[%s209 + $0xf8] sm:$0xff]
        %v281 = vld [vmem:[#allocation5] sm:$0xff]
        %v282 = vld [vmem:[#allocation5 + $0x8] sm:$0xff]
        %v283 = vld [vmem:[#allocation5 + $0x10] sm:$0xff]
        %v284 = vld [vmem:[#allocation5 + $0x18] sm:$0xff]
        %v285 = vld [vmem:[#allocation5 + $0x20] sm:$0xff]
        %v286 = vld [vmem:[#allocation5 + $0x28] sm:$0xff]
        %v287 = vld [vmem:[#allocation5 + $0x30] sm:$0xff]
        %v288 = vld [vmem:[#allocation5 + $0x38] sm:$0xff]
        %v289 = vld [vmem:[#allocation5 + $0x40] sm:$0xff]
        %v290 = vld [vmem:[#allocation5 + $0x48] sm:$0xff]
        %v291 = vld [vmem:[#allocation5 + $0x50] sm:$0xff]
        %v292 = vld [vmem:[#allocation5 + $0x58] sm:$0xff]
        %v293 = vld [vmem:[#allocation5 + $0x60] sm:$0xff]
        %v294 = vld [vmem:[#allocation5 + $0x68] sm:$0xff]
        %v295 = vld [vmem:[#allocation5 + $0x70] sm:$0xff]
        %v296 = vld [vmem:[#allocation5 + $0x78] sm:$0xff]
        %v297 = vld [vmem:[#allocation5 + $0x80] sm:$0xff]
        %v298 = vld [vmem:[#allocation5 + $0x88] sm:$0xff]
        %v299 = vld [vmem:[#allocation5 + $0x90] sm:$0xff]
        %v300 = vld [vmem:[#allocation5 + $0x98] sm:$0xff]
        %v301 = vld [vmem:[#allocation5 + $0xa0] sm:$0xff]
        %v302 = vld [vmem:[#allocation5 + $0xa8] sm:$0xff]
        %v303 = vld [vmem:[#allocation5 + $0xb0] sm:$0xff]
        %v304 = vld [vmem:[#allocation5 + $0xb8] sm:$0xff]
        %v305 = vld [vmem:[#allocation5 + $0xc0] sm:$0xff]
        %v306 = vld [vmem:[#allocation5 + $0xc8] sm:$0xff]
        %v307 = vld [vmem:[#allocation5 + $0xd0] sm:$0xff]
        %v308 = vld [vmem:[#allocation5 + $0xd8] sm:$0xff]
        %v309 = vld [vmem:[#allocation5 + $0xe0] sm:$0xff]
        %v310 = vld [vmem:[#allocation5 + $0xe8] sm:$0xff]
        %v311 = vld [vmem:[#allocation5 + $0xf0] sm:$0xff]
        %v312 = vld [vmem:[#allocation5 + $0xf8] sm:$0xff]
        %v313 = vld [vmem:[#allocation5 + $0x100] sm:$0xff]
        %v314 = vld [vmem:[#allocation5 + $0x108] sm:$0xff]
        %v315 = vld [vmem:[#allocation5 + $0x110] sm:$0xff]
        %v316 = vld [vmem:[#allocation5 + $0x118] sm:$0xff]
        %v317 = vld [vmem:[#allocation5 + $0x120] sm:$0xff]
        %v318 = vld [vmem:[#allocation5 + $0x128] sm:$0xff]
        %v319 = vld [vmem:[#allocation5 + $0x130] sm:$0xff]
        %v320 = vld [vmem:[#allocation5 + $0x138] sm:$0xff]
        %v321 = vld [vmem:[#allocation5 + $0x140] sm:$0xff]
        %v322 = vld [vmem:[#allocation5 + $0x148] sm:$0xff]
        %v323 = vld [vmem:[#allocation5 + $0x150] sm:$0xff]
        %v324 = vld [vmem:[#allocation5 + $0x158] sm:$0xff]
        %v325 = vld [vmem:[#allocation5 + $0x160] sm:$0xff]
        %v326 = vld [vmem:[#allocation5 + $0x168] sm:$0xff]
        %v327 = vld [vmem:[#allocation5 + $0x170] sm:$0xff]
        %v328 = vld [vmem:[#allocation5 + $0x178] sm:$0xff]
        %v329 = vld [vmem:[%s245] sm:$0x7]
        %v331 = vlaneseq
        %v332 = vshrl.u32 %v331, 7
        %v333 = vsub.s32 0, %v332
        %v334 = vrot.slane %v329, %v333
        %v335 = vlaneseq
        %v336 = vshrl.u32 %v335, 7
        %v337 = vsub.s32 1, %v336
        %v338 = vrot.slane %v329, %v337
        %v339 = vlaneseq
        %v340 = vshrl.u32 %v339, 7
        %v341 = vsub.s32 2, %v340
        %v342 = vrot.slane %v329, %v341
        %346 = vmatprep.subr.mxu0 %v327
        %347 = vmatpush1.msra.mxu0 %v326
        %348 = vmatprep.subr.mxu0 %v324
        %349 = vmatpush1.msra.mxu0 %v323
        %350 = vmatprep.subr.mxu0 %v321
        %351 = vmatpush1.msra.mxu0 %v320
        %352 = vmatprep.subr.mxu0 %v318
        %353 = vmatpush1.msra.mxu0 %v317
        %354 = vmatprep.subr.mxu0 %v315
        %355 = vmatpush1.msra.mxu0 %v314
        %356 = vmatprep.subr.mxu0 %v312
        %357 = vmatpush1.msra.mxu0 %v311
        %358 = vmatprep.subr.mxu0 %v309
        %359 = vmatpush1.msra.mxu0 %v308
        %360 = vmatprep.subr.mxu0 %v306
        %361 = vmatpush1.msra.mxu0 %v305
        %362 = vmatprep.subr.mxu0 %v303
        %363 = vmatpush1.msra.mxu0 %v302
        %364 = vmatprep.subr.mxu0 %v300
        %365 = vmatpush1.msra.mxu0 %v299
        %366 = vmatprep.subr.mxu0 %v297
        %367 = vmatpush1.msra.mxu0 %v296
        %368 = vmatprep.subr.mxu0 %v294
        %369 = vmatpush1.msra.mxu0 %v293
        %370 = vmatprep.subr.mxu0 %v291
        %371 = vmatpush1.msra.mxu0 %v290
        %372 = vmatprep.subr.mxu0 %v288
        %373 = vmatpush1.msra.mxu0 %v287
        %374 = vmatprep.subr.mxu0 %v285
        %375 = vmatpush1.msra.mxu0 %v284
        %376 = vmatprep.subr.mxu0 %v282
        %377 = vmatpush1.msra.mxu0 %v281
        %378 = vmatprep.subr.mxu0 0.0
        %379 = vmatpush2.msra.mxu0 0.0
        %380 = vmatprep.subr.mxu0 0.0
        %381 = vmatpush2.msra.mxu0 0.0
        %382 = vmatprep.subr.mxu0 0.0
        %383 = vmatpush2.msra.mxu0 0.0
        %384 = vmatprep.subr.mxu0 0.0
        %385 = vmatpush2.msra.mxu0 0.0
        %386 = vmatprep.subr.mxu0 0.0
        %387 = vmatpush2.msra.mxu0 0.0
        %388 = vmatprep.subr.mxu0 0.0
        %389 = vmatpush2.msra.mxu0 0.0
        %390 = vmatprep.subr.mxu0 0.0
        %391 = vmatpush2.msra.mxu0 0.0
        %392 = vmatprep.subr.mxu0 0.0
        %393 = vmatpush2.msra.mxu0 0.0
        %394 = vmatprep.subr.mxu0 0.0
        %395 = vmatpush2.msra.mxu0 0.0
        %396 = vmatprep.subr.mxu0 0.0
        %397 = vmatpush2.msra.mxu0 0.0
        %398 = vmatprep.subr.mxu0 0.0
        %399 = vmatpush2.msra.mxu0 0.0
        %400 = vmatprep.subr.mxu0 0.0
        %401 = vmatpush2.msra.mxu0 0.0
        %402 = vmatprep.subr.mxu0 0.0
        %403 = vmatpush2.msra.mxu0 0.0
        %404 = vmatprep.subr.mxu0 0.0
        %405 = vmatpush2.msra.mxu0 0.0
        %406 = vmatprep.subr.mxu0 0.0
        %407 = vmatpush2.msra.mxu0 0.0
        %408 = vmatprep.subr.mxu0 0.0
        %409 = vmatpush2.msra.mxu0 0.0
        %410 = vmatprep.mubr.f32.mxu0 0.0
        %411 = vmatmul.mubr.f32.gmra.mxu0 %v249
        %v412 = vpop.f32.mrf.mxu0
        %v413 = vadd.f32 %v334, %v412
        %v414 = vpop.f32.mrf.mxu0
        %v415 = vadd.f32 %v338, %v414
        %416 = vmatprep.mubr.f32.mxu0 0.0
        %417 = vmatmul.mubr.f32.gmra.mxu0 %v250
        %v418 = vpop.f32.mrf.mxu0
        %v419 = vadd.f32 %v334, %v418
        %v420 = vpop.f32.mrf.mxu0
        %v421 = vadd.f32 %v338, %v420
        %422 = vmatprep.mubr.f32.mxu0 0.0
        %423 = vmatmul.mubr.f32.gmra.mxu0 %v251
        %v424 = vpop.f32.mrf.mxu0
        %v425 = vadd.f32 %v334, %v424
        %v426 = vpop.f32.mrf.mxu0
        %v427 = vadd.f32 %v338, %v426
        %428 = vmatprep.mubr.f32.mxu0 0.0
        %429 = vmatmul.mubr.f32.gmra.mxu0 %v252
        %v430 = vpop.f32.mrf.mxu0
        %v431 = vadd.f32 %v334, %v430
        %v432 = vpop.f32.mrf.mxu0
        %v433 = vadd.f32 %v338, %v432
        %434 = vmatprep.mubr.f32.mxu0 0.0
        %435 = vmatmul.mubr.f32.gmra.mxu0 %v253
        %v436 = vpop.f32.mrf.mxu0
        %v437 = vadd.f32 %v334, %v436
        %v438 = vpop.f32.mrf.mxu0
        %v439 = vadd.f32 %v338, %v438
        %440 = vmatprep.mubr.f32.mxu0 0.0
        %441 = vmatmul.mubr.f32.gmra.mxu0 %v254
        %v442 = vpop.f32.mrf.mxu0
        %v443 = vadd.f32 %v334, %v442
        %v444 = vpop.f32.mrf.mxu0
        %v445 = vadd.f32 %v338, %v444
        %446 = vmatprep.mubr.f32.mxu0 0.0
        %447 = vmatmul.mubr.f32.gmra.mxu0 %v255
        %v448 = vpop.f32.mrf.mxu0
        %v449 = vadd.f32 %v334, %v448
        %v450 = vpop.f32.mrf.mxu0
        %v451 = vadd.f32 %v338, %v450
        %452 = vmatprep.mubr.f32.mxu0 0.0
        %453 = vmatmul.mubr.f32.gmra.mxu0 %v256
        %v454 = vpop.f32.mrf.mxu0
        %v455 = vadd.f32 %v334, %v454
        %v456 = vpop.f32.mrf.mxu0
        %v457 = vadd.f32 %v338, %v456
        %458 = vmatprep.mubr.f32.mxu0 0.0
        %459 = vmatmul.mubr.f32.gmra.mxu0 %v257
        %v460 = vpop.f32.mrf.mxu0
        %v461 = vadd.f32 %v334, %v460
        %v462 = vpop.f32.mrf.mxu0
        %v463 = vadd.f32 %v338, %v462
        %464 = vmatprep.mubr.f32.mxu0 0.0
        %465 = vmatmul.mubr.f32.gmra.mxu0 %v258
        %v466 = vpop.f32.mrf.mxu0
        %v467 = vadd.f32 %v334, %v466
        %v468 = vpop.f32.mrf.mxu0
        %v469 = vadd.f32 %v338, %v468
        %470 = vmatprep.mubr.f32.mxu0 0.0
        %471 = vmatmul.mubr.f32.gmra.mxu0 %v259
        %v472 = vpop.f32.mrf.mxu0
        %v473 = vadd.f32 %v334, %v472
        %v474 = vpop.f32.mrf.mxu0
        %v475 = vadd.f32 %v338, %v474
        %476 = vmatprep.mubr.f32.mxu0 0.0
        %477 = vmatmul.mubr.f32.gmra.mxu0 %v260
        %v478 = vpop.f32.mrf.mxu0
        %v479 = vadd.f32 %v334, %v478
        %v480 = vpop.f32.mrf.mxu0
        %v481 = vadd.f32 %v338, %v480
        %482 = vmatprep.mubr.f32.mxu0 0.0
        %483 = vmatmul.mubr.f32.gmra.mxu0 %v261
        %v484 = vpop.f32.mrf.mxu0
        %v485 = vadd.f32 %v334, %v484
        %v486 = vpop.f32.mrf.mxu0
        %v487 = vadd.f32 %v338, %v486
        %488 = vmatprep.mubr.f32.mxu0 0.0
        %489 = vmatmul.mubr.f32.gmra.mxu0 %v262
        %v490 = vpop.f32.mrf.mxu0
        %v491 = vadd.f32 %v334, %v490
        %v492 = vpop.f32.mrf.mxu0
        %v493 = vadd.f32 %v338, %v492
        %494 = vmatprep.mubr.f32.mxu0 0.0
        %495 = vmatmul.mubr.f32.gmra.mxu0 %v263
        %v496 = vpop.f32.mrf.mxu0
        %v497 = vadd.f32 %v334, %v496
        %v498 = vpop.f32.mrf.mxu0
        %v499 = vadd.f32 %v338, %v498
        %500 = vmatprep.mubr.f32.mxu0 0.0
        %501 = vmatmul.mubr.f32.gmra.mxu0 %v264
        %v502 = vpop.f32.mrf.mxu0
        %v503 = vadd.f32 %v334, %v502
        %v504 = vpop.f32.mrf.mxu0
        %v505 = vadd.f32 %v338, %v504
        %506 = vmatprep.mubr.f32.mxu0 0.0
        %507 = vmatmul.mubr.f32.gmra.mxu0 %v265
        %v508 = vpop.f32.mrf.mxu0
        %v509 = vadd.f32 %v334, %v508
        %v510 = vpop.f32.mrf.mxu0
        %v511 = vadd.f32 %v338, %v510
        %512 = vmatprep.mubr.f32.mxu0 0.0
        %513 = vmatmul.mubr.f32.gmra.mxu0 %v266
        %v514 = vpop.f32.mrf.mxu0
        %v515 = vadd.f32 %v334, %v514
        %v516 = vpop.f32.mrf.mxu0
        %v517 = vadd.f32 %v338, %v516
        %518 = vmatprep.mubr.f32.mxu0 0.0
        %519 = vmatmul.mubr.f32.gmra.mxu0 %v267
        %v520 = vpop.f32.mrf.mxu0
        %v521 = vadd.f32 %v334, %v520
        %v522 = vpop.f32.mrf.mxu0
        %v523 = vadd.f32 %v338, %v522
        %524 = vmatprep.mubr.f32.mxu0 0.0
        %525 = vmatmul.mubr.f32.gmra.mxu0 %v268
        %v526 = vpop.f32.mrf.mxu0
        %v527 = vadd.f32 %v334, %v526
        %v528 = vpop.f32.mrf.mxu0
        %v529 = vadd.f32 %v338, %v528
        %530 = vmatprep.mubr.f32.mxu0 0.0
        %531 = vmatmul.mubr.f32.gmra.mxu0 %v269
        %v532 = vpop.f32.mrf.mxu0
        %v533 = vadd.f32 %v334, %v532
        %v534 = vpop.f32.mrf.mxu0
        %v535 = vadd.f32 %v338, %v534
        %536 = vmatprep.mubr.f32.mxu0 0.0
        %537 = vmatmul.mubr.f32.gmra.mxu0 %v270
        %v538 = vpop.f32.mrf.mxu0
        %v539 = vadd.f32 %v334, %v538
        %v540 = vpop.f32.mrf.mxu0
        %v541 = vadd.f32 %v338, %v540
        %542 = vmatprep.mubr.f32.mxu0 0.0
        %543 = vmatmul.mubr.f32.gmra.mxu0 %v271
        %v544 = vpop.f32.mrf.mxu0
        %v545 = vadd.f32 %v334, %v544
        %v546 = vpop.f32.mrf.mxu0
        %v547 = vadd.f32 %v338, %v546
        %548 = vmatprep.mubr.f32.mxu0 0.0
        %549 = vmatmul.mubr.f32.gmra.mxu0 %v272
        %v550 = vpop.f32.mrf.mxu0
        %v551 = vadd.f32 %v334, %v550
        %v552 = vpop.f32.mrf.mxu0
        %v553 = vadd.f32 %v338, %v552
        %554 = vmatprep.mubr.f32.mxu0 0.0
        %555 = vmatmul.mubr.f32.gmra.mxu0 %v273
        %v556 = vpop.f32.mrf.mxu0
        %v557 = vadd.f32 %v334, %v556
        %v558 = vpop.f32.mrf.mxu0
        %v559 = vadd.f32 %v338, %v558
        %560 = vmatprep.mubr.f32.mxu0 0.0
        %561 = vmatmul.mubr.f32.gmra.mxu0 %v274
        %v562 = vpop.f32.mrf.mxu0
        %v563 = vadd.f32 %v334, %v562
        %v564 = vpop.f32.mrf.mxu0
        %v565 = vadd.f32 %v338, %v564
        %566 = vmatprep.mubr.f32.mxu0 0.0
        %567 = vmatmul.mubr.f32.gmra.mxu0 %v275
        %v568 = vpop.f32.mrf.mxu0
        %v569 = vadd.f32 %v334, %v568
        %v570 = vpop.f32.mrf.mxu0
        %v571 = vadd.f32 %v338, %v570
        %572 = vmatprep.mubr.f32.mxu0 0.0
        %573 = vmatmul.mubr.f32.gmra.mxu0 %v276
        %v574 = vpop.f32.mrf.mxu0
        %v575 = vadd.f32 %v334, %v574
        %v576 = vpop.f32.mrf.mxu0
        %v577 = vadd.f32 %v338, %v576
        %578 = vmatprep.mubr.f32.mxu0 0.0
        %579 = vmatmul.mubr.f32.gmra.mxu0 %v277
        %v580 = vpop.f32.mrf.mxu0
        %v581 = vadd.f32 %v334, %v580
        %v582 = vpop.f32.mrf.mxu0
        %v583 = vadd.f32 %v338, %v582
        %584 = vmatprep.mubr.f32.mxu0 0.0
        %585 = vmatmul.mubr.f32.gmra.mxu0 %v278
        %v586 = vpop.f32.mrf.mxu0
        %v587 = vadd.f32 %v334, %v586
        %v588 = vpop.f32.mrf.mxu0
        %v589 = vadd.f32 %v338, %v588
        %590 = vmatprep.mubr.f32.mxu0 0.0
        %591 = vmatmul.mubr.f32.gmra.mxu0 %v279
        %v592 = vpop.f32.mrf.mxu0
        %v593 = vadd.f32 %v334, %v592
        %v594 = vpop.f32.mrf.mxu0
        %v595 = vadd.f32 %v338, %v594
        %596 = vmatprep.mubr.f32.mxu0 0.0
        %597 = vmatmul.mubr.f32.gmra.mxu0 %v280
        %v598 = vpop.f32.mrf.mxu0
        %v599 = vadd.f32 %v334, %v598
        %v600 = vpop.f32.mrf.mxu0
        %v601 = vadd.f32 %v338, %v600
        %602 = vdwg.mxu0
        %603 = vmatprep.subr.mxu0 0.0
        %604 = vmatpush1.msra.mxu0 %v328
        %605 = vmatprep.subr.mxu0 0.0
        %606 = vmatpush1.msra.mxu0 %v325
        %607 = vmatprep.subr.mxu0 0.0
        %608 = vmatpush1.msra.mxu0 %v322
        %609 = vmatprep.subr.mxu0 0.0
        %610 = vmatpush1.msra.mxu0 %v319
        %611 = vmatprep.subr.mxu0 0.0
        %612 = vmatpush1.msra.mxu0 %v316
        %613 = vmatprep.subr.mxu0 0.0
        %614 = vmatpush1.msra.mxu0 %v313
        %615 = vmatprep.subr.mxu0 0.0
        %616 = vmatpush1.msra.mxu0 %v310
        %617 = vmatprep.subr.mxu0 0.0
        %618 = vmatpush1.msra.mxu0 %v307
        %619 = vmatprep.subr.mxu0 0.0
        %620 = vmatpush1.msra.mxu0 %v304
        %621 = vmatprep.subr.mxu0 0.0
        %622 = vmatpush1.msra.mxu0 %v301
        %623 = vmatprep.subr.mxu0 0.0
        %624 = vmatpush1.msra.mxu0 %v298
        %625 = vmatprep.subr.mxu0 0.0
        %626 = vmatpush1.msra.mxu0 %v295
        %627 = vmatprep.subr.mxu0 0.0
        %628 = vmatpush1.msra.mxu0 %v292
        %629 = vmatprep.subr.mxu0 0.0
        %630 = vmatpush1.msra.mxu0 %v289
        %631 = vmatprep.subr.mxu0 0.0
        %632 = vmatpush1.msra.mxu0 %v286
        %633 = vmatprep.subr.mxu0 0.0
        %634 = vmatpush1.msra.mxu0 %v283
        %635 = vmatprep.subr.mxu0 0.0
        %636 = vmatpush2.msra.mxu0 0.0
        %637 = vmatprep.subr.mxu0 0.0
        %638 = vmatpush2.msra.mxu0 0.0
        %639 = vmatprep.subr.mxu0 0.0
        %640 = vmatpush2.msra.mxu0 0.0
        %641 = vmatprep.subr.mxu0 0.0
        %642 = vmatpush2.msra.mxu0 0.0
        %643 = vmatprep.subr.mxu0 0.0
        %644 = vmatpush2.msra.mxu0 0.0
        %645 = vmatprep.subr.mxu0 0.0
        %646 = vmatpush2.msra.mxu0 0.0
        %647 = vmatprep.subr.mxu0 0.0
        %648 = vmatpush2.msra.mxu0 0.0
        %649 = vmatprep.subr.mxu0 0.0
        %650 = vmatpush2.msra.mxu0 0.0
        %651 = vmatprep.subr.mxu0 0.0
        %652 = vmatpush2.msra.mxu0 0.0
        %653 = vmatprep.subr.mxu0 0.0
        %654 = vmatpush2.msra.mxu0 0.0
        %655 = vmatprep.subr.mxu0 0.0
        %656 = vmatpush2.msra.mxu0 0.0
        %657 = vmatprep.subr.mxu0 0.0
        %658 = vmatpush2.msra.mxu0 0.0
        %659 = vmatprep.subr.mxu0 0.0
        %660 = vmatpush2.msra.mxu0 0.0
        %661 = vmatprep.subr.mxu0 0.0
        %662 = vmatpush2.msra.mxu0 0.0
        %663 = vmatprep.subr.mxu0 0.0
        %664 = vmatpush2.msra.mxu0 0.0
        %665 = vmatprep.subr.mxu0 0.0
        %666 = vmatpush2.msra.mxu0 0.0
        %667 = vmatprep.mubr.f32.mxu0 0.0
        %668 = vmatmul.mubr.f32.gmra.mxu0 %v249
        %v669 = vpop.f32.mrf.mxu0
        %v670 = vadd.f32 %v342, %v669
        %v671 = vpop.f32.mrf.mxu0
        %672 = vmatprep.mubr.f32.mxu0 0.0
        %673 = vmatmul.mubr.f32.gmra.mxu0 %v250
        %v674 = vpop.f32.mrf.mxu0
        %v675 = vadd.f32 %v342, %v674
        %v676 = vpop.f32.mrf.mxu0
        %677 = vmatprep.mubr.f32.mxu0 0.0
        %678 = vmatmul.mubr.f32.gmra.mxu0 %v251
        %v679 = vpop.f32.mrf.mxu0
        %v680 = vadd.f32 %v342, %v679
        %v681 = vpop.f32.mrf.mxu0
        %682 = vmatprep.mubr.f32.mxu0 0.0
        %683 = vmatmul.mubr.f32.gmra.mxu0 %v252
        %v684 = vpop.f32.mrf.mxu0
        %v685 = vadd.f32 %v342, %v684
        %v686 = vpop.f32.mrf.mxu0
        %687 = vmatprep.mubr.f32.mxu0 0.0
        %688 = vmatmul.mubr.f32.gmra.mxu0 %v253
        %v689 = vpop.f32.mrf.mxu0
        %v690 = vadd.f32 %v342, %v689
        %v691 = vpop.f32.mrf.mxu0
        %692 = vmatprep.mubr.f32.mxu0 0.0
        %693 = vmatmul.mubr.f32.gmra.mxu0 %v254
        %v694 = vpop.f32.mrf.mxu0
        %v695 = vadd.f32 %v342, %v694
        %v696 = vpop.f32.mrf.mxu0
        %697 = vmatprep.mubr.f32.mxu0 0.0
        %698 = vmatmul.mubr.f32.gmra.mxu0 %v255
        %v699 = vpop.f32.mrf.mxu0
        %v700 = vadd.f32 %v342, %v699
        %v701 = vpop.f32.mrf.mxu0
        %702 = vmatprep.mubr.f32.mxu0 0.0
        %703 = vmatmul.mubr.f32.gmra.mxu0 %v256
        %v704 = vpop.f32.mrf.mxu0
        %v705 = vadd.f32 %v342, %v704
        %v706 = vpop.f32.mrf.mxu0
        %707 = vmatprep.mubr.f32.mxu0 0.0
        %708 = vmatmul.mubr.f32.gmra.mxu0 %v257
        %v709 = vpop.f32.mrf.mxu0
        %v710 = vadd.f32 %v342, %v709
        %v711 = vpop.f32.mrf.mxu0
        %712 = vmatprep.mubr.f32.mxu0 0.0
        %713 = vmatmul.mubr.f32.gmra.mxu0 %v258
        %v714 = vpop.f32.mrf.mxu0
        %v715 = vadd.f32 %v342, %v714
        %v716 = vpop.f32.mrf.mxu0
        %717 = vmatprep.mubr.f32.mxu0 0.0
        %718 = vmatmul.mubr.f32.gmra.mxu0 %v259
        %v719 = vpop.f32.mrf.mxu0
        %v720 = vadd.f32 %v342, %v719
        %v721 = vpop.f32.mrf.mxu0
        %722 = vmatprep.mubr.f32.mxu0 0.0
        %723 = vmatmul.mubr.f32.gmra.mxu0 %v260
        %v724 = vpop.f32.mrf.mxu0
        %v725 = vadd.f32 %v342, %v724
        %v726 = vpop.f32.mrf.mxu0
        %727 = vmatprep.mubr.f32.mxu0 0.0
        %728 = vmatmul.mubr.f32.gmra.mxu0 %v261
        %v729 = vpop.f32.mrf.mxu0
        %v730 = vadd.f32 %v342, %v729
        %v731 = vpop.f32.mrf.mxu0
        %732 = vmatprep.mubr.f32.mxu0 0.0
        %733 = vmatmul.mubr.f32.gmra.mxu0 %v262
        %v734 = vpop.f32.mrf.mxu0
        %v735 = vadd.f32 %v342, %v734
        %v736 = vpop.f32.mrf.mxu0
        %737 = vmatprep.mubr.f32.mxu0 0.0
        %738 = vmatmul.mubr.f32.gmra.mxu0 %v263
        %v739 = vpop.f32.mrf.mxu0
        %v740 = vadd.f32 %v342, %v739
        %v741 = vpop.f32.mrf.mxu0
        %742 = vmatprep.mubr.f32.mxu0 0.0
        %743 = vmatmul.mubr.f32.gmra.mxu0 %v264
        %v744 = vpop.f32.mrf.mxu0
        %v745 = vadd.f32 %v342, %v744
        %v746 = vpop.f32.mrf.mxu0
        %747 = vmatprep.mubr.f32.mxu0 0.0
        %748 = vmatmul.mubr.f32.gmra.mxu0 %v265
        %v749 = vpop.f32.mrf.mxu0
        %v750 = vadd.f32 %v342, %v749
        %v751 = vpop.f32.mrf.mxu0
        %752 = vmatprep.mubr.f32.mxu0 0.0
        %753 = vmatmul.mubr.f32.gmra.mxu0 %v266
        %v754 = vpop.f32.mrf.mxu0
        %v755 = vadd.f32 %v342, %v754
        %v756 = vpop.f32.mrf.mxu0
        %757 = vmatprep.mubr.f32.mxu0 0.0
        %758 = vmatmul.mubr.f32.gmra.mxu0 %v267
        %v759 = vpop.f32.mrf.mxu0
        %v760 = vadd.f32 %v342, %v759
        %v761 = vpop.f32.mrf.mxu0
        %762 = vmatprep.mubr.f32.mxu0 0.0
        %763 = vmatmul.mubr.f32.gmra.mxu0 %v268
        %v764 = vpop.f32.mrf.mxu0
        %v765 = vadd.f32 %v342, %v764
        %v766 = vpop.f32.mrf.mxu0
        %767 = vmatprep.mubr.f32.mxu0 0.0
        %768 = vmatmul.mubr.f32.gmra.mxu0 %v269
        %v769 = vpop.f32.mrf.mxu0
        %v770 = vadd.f32 %v342, %v769
        %v771 = vpop.f32.mrf.mxu0
        %772 = vmatprep.mubr.f32.mxu0 0.0
        %773 = vmatmul.mubr.f32.gmra.mxu0 %v270
        %v774 = vpop.f32.mrf.mxu0
        %v775 = vadd.f32 %v342, %v774
        %v776 = vpop.f32.mrf.mxu0
        %777 = vmatprep.mubr.f32.mxu0 0.0
        %778 = vmatmul.mubr.f32.gmra.mxu0 %v271
        %v779 = vpop.f32.mrf.mxu0
        %v780 = vadd.f32 %v342, %v779
        %v781 = vpop.f32.mrf.mxu0
        %782 = vmatprep.mubr.f32.mxu0 0.0
        %783 = vmatmul.mubr.f32.gmra.mxu0 %v272
        %v784 = vpop.f32.mrf.mxu0
        %v785 = vadd.f32 %v342, %v784
        %v786 = vpop.f32.mrf.mxu0
        %787 = vmatprep.mubr.f32.mxu0 0.0
        %788 = vmatmul.mubr.f32.gmra.mxu0 %v273
        %v789 = vpop.f32.mrf.mxu0
        %v790 = vadd.f32 %v342, %v789
        %v791 = vpop.f32.mrf.mxu0
        %792 = vmatprep.mubr.f32.mxu0 0.0
        %793 = vmatmul.mubr.f32.gmra.mxu0 %v274
        %v794 = vpop.f32.mrf.mxu0
        %v795 = vadd.f32 %v342, %v794
        %v796 = vpop.f32.mrf.mxu0
        %797 = vmatprep.mubr.f32.mxu0 0.0
        %798 = vmatmul.mubr.f32.gmra.mxu0 %v275
        %v799 = vpop.f32.mrf.mxu0
        %v800 = vadd.f32 %v342, %v799
        %v801 = vpop.f32.mrf.mxu0
        %802 = vmatprep.mubr.f32.mxu0 0.0
        %803 = vmatmul.mubr.f32.gmra.mxu0 %v276
        %v804 = vpop.f32.mrf.mxu0
        %v805 = vadd.f32 %v342, %v804
        %v806 = vpop.f32.mrf.mxu0
        %807 = vmatprep.mubr.f32.mxu0 0.0
        %808 = vmatmul.mubr.f32.gmra.mxu0 %v277
        %v809 = vpop.f32.mrf.mxu0
        %v810 = vadd.f32 %v342, %v809
        %v811 = vpop.f32.mrf.mxu0
        %812 = vmatprep.mubr.f32.mxu0 0.0
        %813 = vmatmul.mubr.f32.gmra.mxu0 %v278
        %v814 = vpop.f32.mrf.mxu0
        %v815 = vadd.f32 %v342, %v814
        %v816 = vpop.f32.mrf.mxu0
        %817 = vmatprep.mubr.f32.mxu0 0.0
        %818 = vmatmul.mubr.f32.gmra.mxu0 %v279
        %v819 = vpop.f32.mrf.mxu0
        %v820 = vadd.f32 %v342, %v819
        %v821 = vpop.f32.mrf.mxu0
        %822 = vmatprep.mubr.f32.mxu0 0.0
        %823 = vmatmul.mubr.f32.gmra.mxu0 %v280
        %v824 = vpop.f32.mrf.mxu0
        %v825 = vadd.f32 %v342, %v824
        %v826 = vpop.f32.mrf.mxu0
        %827 = vdwg.mxu0
        %828 = vst [vmem:[%s239] sm:$0xff] %v413
        %829 = vst [vmem:[%s239 + $0x8] sm:$0xff] %v415
        %830 = vst [vmem:[%s239 + $0x10] sm:$0xff] %v670
        %831 = vst [vmem:[%s239 + $0x18] sm:$0xff] %v419
        %832 = vst [vmem:[%s239 + $0x20] sm:$0xff] %v421
        %833 = vst [vmem:[%s239 + $0x28] sm:$0xff] %v675
        %834 = vst [vmem:[%s239 + $0x30] sm:$0xff] %v425
        %835 = vst [vmem:[%s239 + $0x38] sm:$0xff] %v427
        %836 = vst [vmem:[%s239 + $0x40] sm:$0xff] %v680
        %837 = vst [vmem:[%s239 + $0x48] sm:$0xff] %v431
        %838 = vst [vmem:[%s239 + $0x50] sm:$0xff] %v433
        %839 = vst [vmem:[%s239 + $0x58] sm:$0xff] %v685
        %840 = vst [vmem:[%s239 + $0x60] sm:$0xff] %v437
        %841 = vst [vmem:[%s239 + $0x68] sm:$0xff] %v439
        %842 = vst [vmem:[%s239 + $0x70] sm:$0xff] %v690
        %843 = vst [vmem:[%s239 + $0x78] sm:$0xff] %v443
        %844 = vst [vmem:[%s239 + $0x80] sm:$0xff] %v445
        %845 = vst [vmem:[%s239 + $0x88] sm:$0xff] %v695
        %846 = vst [vmem:[%s239 + $0x90] sm:$0xff] %v449
        %847 = vst [vmem:[%s239 + $0x98] sm:$0xff] %v451
        %848 = vst [vmem:[%s239 + $0xa0] sm:$0xff] %v700
        %849 = vst [vmem:[%s239 + $0xa8] sm:$0xff] %v455
        %850 = vst [vmem:[%s239 + $0xb0] sm:$0xff] %v457
        %851 = vst [vmem:[%s239 + $0xb8] sm:$0xff] %v705
        %852 = vst [vmem:[%s239 + $0xc0] sm:$0xff] %v461
        %853 = vst [vmem:[%s239 + $0xc8] sm:$0xff] %v463
        %854 = vst [vmem:[%s239 + $0xd0] sm:$0xff] %v710
        %855 = vst [vmem:[%s239 + $0xd8] sm:$0xff] %v467
        %856 = vst [vmem:[%s239 + $0xe0] sm:$0xff] %v469
        %857 = vst [vmem:[%s239 + $0xe8] sm:$0xff] %v715
        %858 = vst [vmem:[%s239 + $0xf0] sm:$0xff] %v473
        %859 = vst [vmem:[%s239 + $0xf8] sm:$0xff] %v475
        %860 = vst [vmem:[%s239 + $0x100] sm:$0xff] %v720
        %861 = vst [vmem:[%s239 + $0x108] sm:$0xff] %v479
        %862 = vst [vmem:[%s239 + $0x110] sm:$0xff] %v481
        %863 = vst [vmem:[%s239 + $0x118] sm:$0xff] %v725
        %864 = vst [vmem:[%s239 + $0x120] sm:$0xff] %v485
        %865 = vst [vmem:[%s239 + $0x128] sm:$0xff] %v487
        %866 = vst [vmem:[%s239 + $0x130] sm:$0xff] %v730
        %867 = vst [vmem:[%s239 + $0x138] sm:$0xff] %v491
        %868 = vst [vmem:[%s239 + $0x140] sm:$0xff] %v493
        %869 = vst [vmem:[%s239 + $0x148] sm:$0xff] %v735
        %870 = vst [vmem:[%s239 + $0x150] sm:$0xff] %v497
        %871 = vst [vmem:[%s239 + $0x158] sm:$0xff] %v499
        %872 = vst [vmem:[%s239 + $0x160] sm:$0xff] %v740
        %873 = vst [vmem:[%s239 + $0x168] sm:$0xff] %v503
        %874 = vst [vmem:[%s239 + $0x170] sm:$0xff] %v505
        %875 = vst [vmem:[%s239 + $0x178] sm:$0xff] %v745
        %876 = vst [vmem:[%s239 + $0x180] sm:$0xff] %v509
        %877 = vst [vmem:[%s239 + $0x188] sm:$0xff] %v511
        %878 = vst [vmem:[%s239 + $0x190] sm:$0xff] %v750
        %879 = vst [vmem:[%s239 + $0x198] sm:$0xff] %v515
        %880 = vst [vmem:[%s239 + $0x1a0] sm:$0xff] %v517
        %881 = vst [vmem:[%s239 + $0x1a8] sm:$0xff] %v755
        %882 = vst [vmem:[%s239 + $0x1b0] sm:$0xff] %v521
        %883 = vst [vmem:[%s239 + $0x1b8] sm:$0xff] %v523
        %884 = vst [vmem:[%s239 + $0x1c0] sm:$0xff] %v760
        %885 = vst [vmem:[%s239 + $0x1c8] sm:$0xff] %v527
        %886 = vst [vmem:[%s239 + $0x1d0] sm:$0xff] %v529
        %887 = vst [vmem:[%s239 + $0x1d8] sm:$0xff] %v765
        %888 = vst [vmem:[%s239 + $0x1e0] sm:$0xff] %v533
        %889 = vst [vmem:[%s239 + $0x1e8] sm:$0xff] %v535
        %890 = vst [vmem:[%s239 + $0x1f0] sm:$0xff] %v770
        %891 = vst [vmem:[%s239 + $0x1f8] sm:$0xff] %v539
        %892 = vst [vmem:[%s239 + $0x200] sm:$0xff] %v541
        %893 = vst [vmem:[%s239 + $0x208] sm:$0xff] %v775
        %894 = vst [vmem:[%s239 + $0x210] sm:$0xff] %v545
        %895 = vst [vmem:[%s239 + $0x218] sm:$0xff] %v547
        %896 = vst [vmem:[%s239 + $0x220] sm:$0xff] %v780
        %897 = vst [vmem:[%s239 + $0x228] sm:$0xff] %v551
        %898 = vst [vmem:[%s239 + $0x230] sm:$0xff] %v553
        %899 = vst [vmem:[%s239 + $0x238] sm:$0xff] %v785
        %900 = vst [vmem:[%s239 + $0x240] sm:$0xff] %v557
        %901 = vst [vmem:[%s239 + $0x248] sm:$0xff] %v559
        %902 = vst [vmem:[%s239 + $0x250] sm:$0xff] %v790
        %903 = vst [vmem:[%s239 + $0x258] sm:$0xff] %v563
        %904 = vst [vmem:[%s239 + $0x260] sm:$0xff] %v565
        %905 = vst [vmem:[%s239 + $0x268] sm:$0xff] %v795
        %906 = vst [vmem:[%s239 + $0x270] sm:$0xff] %v569
        %907 = vst [vmem:[%s239 + $0x278] sm:$0xff] %v571
        %908 = vst [vmem:[%s239 + $0x280] sm:$0xff] %v800
        %909 = vst [vmem:[%s239 + $0x288] sm:$0xff] %v575
        %910 = vst [vmem:[%s239 + $0x290] sm:$0xff] %v577
        %911 = vst [vmem:[%s239 + $0x298] sm:$0xff] %v805
        %912 = vst [vmem:[%s239 + $0x2a0] sm:$0xff] %v581
        %913 = vst [vmem:[%s239 + $0x2a8] sm:$0xff] %v583
        %914 = vst [vmem:[%s239 + $0x2b0] sm:$0xff] %v810
        %915 = vst [vmem:[%s239 + $0x2b8] sm:$0xff] %v587
        %916 = vst [vmem:[%s239 + $0x2c0] sm:$0xff] %v589
        %917 = vst [vmem:[%s239 + $0x2c8] sm:$0xff] %v815
        %918 = vst [vmem:[%s239 + $0x2d0] sm:$0xff] %v593
        %919 = vst [vmem:[%s239 + $0x2d8] sm:$0xff] %v595
        %920 = vst [vmem:[%s239 + $0x2e0] sm:$0xff] %v820
        %921 = vst [vmem:[%s239 + $0x2e8] sm:$0xff] %v599
        %922 = vst [vmem:[%s239 + $0x2f0] sm:$0xff] %v601
        %923 = vst [vmem:[%s239 + $0x2f8] sm:$0xff] %v825
        %s924 = sand.u32 %s121, 1
        %s925 = scalar_lea.sflag [#allocation4], %s924
        %s926 = sand.u32 %s121, 1
        %s927 = smul.addr %s926, 768
        %s928 = scalar_lea.vmem [#allocation7], %s927
        // Predicated region
        $region41: #{tpu_custom_call.1} parent=31 // pred_check
          %p929 = pneg %p131
        $region42: #{tpu_custom_call.1} parent=31 // pred_check_branch
          %931 = sbr.rel (%p929) target = $region44
        $region43: #{tpu_custom_call.1} parent=31 // pred_region
          %s932 = smul.u32 32, %s25
          %s933 = smul.u32 3, %s26
          %s935 = ssub.s32 12288, 12288
          %936 = vsyncadd %s925, %s935
          %s937 = smul.addr %s932, 3
          %s938 = sadd.s32 %s933, %s937
          %s939 = smul.addr %s938, 128
          %s940 = scalar_lea.hbm %s3, %s939
          %s941 = sshll.u32 %s928, 4
          %s942 = int_to_ptr.vmem [resolvable:$true] %s941
          %947 = dma.vmem_to_hbm [thread:$0]  %s942, 12288, %s940, %s925, 384, 384, 24
        $region44: #{tpu_custom_call.1} parent=31 // pred_fallthru
          _
      $region32: #{tpu_custom_call.1} parent=5 // pred_fallthru
        _
      %p948 = scmp.le.s32.totalorder 2, %s16
      // Predicated region
      $region45: #{tpu_custom_call.1} parent=5 // pred_check
        %p949 = pneg %p948
      $region46: #{tpu_custom_call.1} parent=5 // pred_check_branch
        %951 = sbr.rel (%p949) target = $region48
      $region47: #{tpu_custom_call.1} parent=5 // pred_region
        %s952 = ssub.s32 %s16, 2
        // Predicated region
        $region49: #{tpu_custom_call.1} parent=47 // pred_check
          %p953 = pneg %p137
        $region50: #{tpu_custom_call.1} parent=47 // pred_check_branch
          %955 = sbr.rel (%p953) target = $region52
        $region51: #{tpu_custom_call.1} parent=47 // pred_region
          %s956 = sand.u32 %s122, 1
          %s957 = scalar_lea.sflag [#allocation4], %s956
          %s958 = sand.u32 %s122, 1
          %s959 = smul.addr %s958, 768
          %s960 = scalar_lea.vmem [#allocation7], %s959
          %961 = dma.done %s957, 12288
        $region52: #{tpu_custom_call.1} parent=47 // pred_fallthru
          _
      $region48: #{tpu_custom_call.1} parent=5 // pred_fallthru
        _
    $region6: #{tpu_custom_call.1} parent=1 // loop_footer
      %s20 = sadd.s32 1, %s16
    $region7: #{tpu_custom_call.1} parent=1 // loop_footer_branch
      %15 = sbr.rel target = $region3
    $region8: #{tpu_custom_call.1} parent=1 // loop_exit
      _
    %962 = vsyncpa [#allocation3], 1
    %s963 = scalar_lea.sflag [#allocation3], 1
    %964 = vsyncpa %s963, 1
    %965 = vsyncpa [#allocation6], 1
    %966 = vsyncpa [#allocation4], 1
    %s967 = scalar_lea.sflag [#allocation4], 1
    %968 = vsyncpa %s967, 1

</llo_original>
